<compile_context>
chip_gen: v5e
topology: v5e:2x2
jax: 0.10.0
libtpu: 0.0.40
codegen_flags: <defaults>
</compile_context>

<pallas_src>
import functools

import jax
import jax.numpy as jnp
from jax.experimental import pallas as pl
from jax.experimental.pallas import tpu as pltpu


_LANE = 128

_ACTIVATIONS = {
    None: lambda t: t,
    "none": lambda t: t,
    "relu": lambda t: jnp.maximum(t, 0.0),
    "lrelu": lambda t: jnp.where(t >= 0.0, t, 0.01 * t),
    "leaky": lambda t: jnp.where(t >= 0.0, t, 0.01 * t),
    "leakyrelu": lambda t: jnp.where(t >= 0.0, t, 0.01 * t),
    "tanh": jnp.tanh,
    "sigmoid": jax.nn.sigmoid,
}
# TODO(synk): 'prelu' (learned slope), BatchNorm (use_bn), spectral norm (use_sn) and the 1x1
# shortcut conv for in_c != out_c are not wired up; RB(channels=int) implies identity shortcut.


def _rb_kernel(x_ref, w1_ref, b1_ref, w2_ref, b2_ref, o_ref, patches_ref, *,
               K, H, LW, nb, activation):
    """Whole residual block for one batch-block.

    x_ref      : (nb, H, LW)     input rows, lane = w*C + c, zero padded to LW lanes
    w1_ref     : (K*LW, LW)      banded conv1 weights (horizontal taps + SAME pad folded in)
    b1_ref     : (1, LW)         conv1 bias tiled over w (zero in pad lanes)
    w2_ref     : (K*LW, LW)      banded conv2 weights
    b2_ref     : (1, LW)         conv2 bias
    o_ref      : (nb, H, LW)     output rows
    patches_ref: (nb, H, K*LW)   im2col-by-rows scratch (reused by both convs)
    """
    p = K // 2
    f32 = jnp.float32
    act = _ACTIVATIONS[activation]

    # Zero ONLY the vertical border strips of the patch matrix (taps that would read above the
    # first / below the last image row). Everything else is fully overwritten below; the strips
    # stay valid for both convs. No full-buffer memsets.
    for kh in range(K):
        d = kh - p
        cols = slice(kh * LW, (kh + 1) * LW)
        if d < 0:
            patches_ref[:, 0:-d, cols] = jnp.zeros((nb, -d, LW), f32)
        elif d > 0:
            patches_ref[:, H - d:H, cols] = jnp.zeros((nb, d, LW), f32)

    def conv(rows, w_ref, b_ref):
        # rows: (nb, H, LW). Lane block kh of the patch matrix holds the rows shifted by
        # (kh - p); horizontal taps live inside the banded weight. All stores are full
        # 128-lane tiles at lane offsets that are multiples of 128.
        for kh in range(K):
            d = kh - p
            cols = slice(kh * LW, (kh + 1) * LW)
            if d < 0:
                patches_ref[:, -d:, cols] = rows[:, :H + d, :]
            elif d > 0:
                patches_ref[:, :H - d, cols] = rows[:, d:, :]
            else:
                patches_ref[:, :, cols] = rows
        pm = patches_ref[...].reshape(nb * H, K * LW)
        # ONE MXU matmul per conv (contraction dim K*LW), bias added once.
        return jnp.dot(pm, w_ref[...], preferred_element_type=f32) + b_ref[...]

    x = x_ref[...].astype(f32)                       # (nb, H, LW)
    h = act(conv(x, w1_ref, b1_ref))                 # (nb*H, LW)
    out = conv(h.reshape(nb, H, LW), w2_ref, b2_ref)
    out = out + x.reshape(nb * H, LW)                # identity shortcut (in_c == out_c)
    o_ref[...] = out.reshape(nb, H, LW).astype(o_ref.dtype)


def _round_up(v, m):
    return (v + m - 1) // m * m


def _banded_weight(w_hwio, W, lane_w):
    """Fold the horizontal taps + SAME zero padding of a KxK conv into a dense (K*lane_w, lane_w)
    matrix for the row layout (lane index = w*C + c). Rows/cols beyond W*C are zero padding."""
    K, K2, Cin, Cout = w_hwio.shape
    assert K == K2 and K % 2 == 1
    p = K // 2
    w_src = jnp.arange(W)[:, None, None]
    kw = jnp.arange(K)[None, :, None]
    w_out = jnp.arange(W)[None, None, :]
    band = (w_src == (w_out + kw - p)).astype(w_hwio.dtype)          # (W, K, W)
    B = jnp.einsum("hkio,skw->hsiwo", w_hwio, band)                  # (K, W, Cin, W, Cout)
    B = B.reshape(K, W * Cin, W * Cout)
    B = jnp.pad(B, ((0, 0), (0, lane_w - W * Cin), (0, lane_w - W * Cout)))
    return B.reshape(K * lane_w, lane_w)


@functools.partial(jax.jit, static_argnames=("activation", "batch_block"))
def rb_forward(x_nhwc, w1_hwio, b1, w2_hwio, b2, activation="relu", batch_block=None):
    """Residual block forward. x_nhwc: (N, H, W, C) float32, weights HWIO."""
    N, H, W, Cin = x_nhwc.shape
    K = w1_hwio.shape[0]
    Cout = w1_hwio.shape[-1]
    assert Cin == Cout, "identity shortcut requires in_c == out_c"
    assert K % 2 == 1

    LW = _round_up(W * Cout, _LANE)                   # lane-dense row width (multiple of 128)
    nb = N if batch_block is None else batch_block    # lower for megacore (v7x) at larger N
    assert N % nb == 0

    # Wrapper-side layout plumbing (lane-dense rows + banded weights + tiled bias).
    x_rows = jnp.pad(x_nhwc.reshape(N, H, W * Cin),
                     ((0, 0), (0, 0), (0, LW - W * Cin)))
    wb1 = _banded_weight(w1_hwio, W, LW)
    wb2 = _banded_weight(w2_hwio, W, LW)
    b1_row = jnp.pad(jnp.tile(b1, W), (0, LW - W * Cout)).reshape(1, LW)
    b2_row = jnp.pad(jnp.tile(b2, W), (0, LW - W * Cout)).reshape(1, LW)

    kernel = functools.partial(_rb_kernel, K=K, H=H, LW=LW, nb=nb, activation=activation)

    out_rows = pl.pallas_call(
        kernel,
        out_shape=jax.ShapeDtypeStruct((N, H, LW), x_nhwc.dtype),
        grid_spec=pltpu.PrefetchScalarGridSpec(
            num_scalar_prefetch=0,
            grid=(N // nb,),
            in_specs=[
                pl.BlockSpec((nb, H, LW), lambda b: (b, 0, 0)),
                pl.BlockSpec((K * LW, LW), lambda b: (0, 0)),   # weights fetched once
                pl.BlockSpec((1, LW), lambda b: (0, 0)),
                pl.BlockSpec((K * LW, LW), lambda b: (0, 0)),
                pl.BlockSpec((1, LW), lambda b: (0, 0)),
            ],
            out_specs=pl.BlockSpec((nb, H, LW), lambda b: (b, 0, 0)),
            scratch_shapes=[
                pltpu.VMEM((nb, H, K * LW), jnp.float32),       # im2col-by-rows patches
            ],
        ),
        compiler_params=pltpu.CompilerParams(
            dimension_semantics=("parallel",)),
    )(x_rows, wb1, b1_row, wb2, b2_row)

    return out_rows[:, :, :W * Cout].reshape(N, H, W, Cout)


def rb_reference(x_nhwc, w1_hwio, b1, w2_hwio, b2):
    """Pure-JAX reference for correctness checking."""
    dn = jax.lax.conv_dimension_numbers(
        x_nhwc.shape, w1_hwio.shape, ("NHWC", "HWIO", "NHWC"))
    h = jax.lax.conv_general_dilated(
        x_nhwc, w1_hwio, (1, 1), "SAME", dimension_numbers=dn) + b1
    h = jnp.maximum(h, 0.0)
    o = jax.lax.conv_general_dilated(
        h, w2_hwio, (1, 1), "SAME", dimension_numbers=dn) + b2
    return o + x_nhwc


if __name__ == "__main__":
    # RB(channels=4, kernel_size=3, activation='relu', use_bias=True)
    N, C, H, W = 2, 4, 16, 16
    K = 3

    key = jax.random.PRNGKey(0)
    kx, kw1, kb1, kw2, kb2 = jax.random.split(key, 5)

    # Input in PyTorch NCHW convention, converted to NHWC for the kernel.
    x_nchw = jax.random.normal(kx, (N, C, H, W), dtype=jnp.float32)
    x_nhwc = jnp.transpose(x_nchw, (0, 2, 3, 1))

    # Parameters in PyTorch shapes: weight OIHW = (out_c, in_c, K, K); converted to HWIO.
    w1_oihw = jax.random.normal(kw1, (C, C, K, K), dtype=jnp.float32) * 0.1
    b1 = jax.random.normal(kb1, (C,), dtype=jnp.float32) * 0.1
    w2_oihw = jax.random.normal(kw2, (C, C, K, K), dtype=jnp.float32) * 0.1
    b2 = jax.random.normal(kb2, (C,), dtype=jnp.float32) * 0.1

    w1_hwio = jnp.transpose(w1_oihw, (2, 3, 1, 0))
    w2_hwio = jnp.transpose(w2_oihw, (2, 3, 1, 0))

    out = rb_forward(x_nhwc, w1_hwio, b1, w2_hwio, b2)
    out = jax.block_until_ready(out)

    ref = rb_reference(x_nhwc, w1_hwio, b1, w2_hwio, b2)
    assert out.shape == (N, H, W, C)
    assert jnp.allclose(out, ref, atol=5e-4, rtol=5e-4), "mismatch vs reference"

    # Back to NCHW for PyTorch convention: jnp.transpose(out, (0, 3, 1, 2))
    print("KERNEL_OK")
</pallas_src>

<mosaic_0001>
module attributes {stable_mosaic.version = 11 : i64} {
  func.func @_rb_kernel(%arg0: i32, %arg1: memref<2x16x128xf32, #tpu.memory_space<vmem>>, %arg2: memref<384x128xf32, #tpu.memory_space<vmem>>, %arg3: memref<1x128xf32, #tpu.memory_space<vmem>>, %arg4: memref<384x128xf32, #tpu.memory_space<vmem>>, %arg5: memref<1x128xf32, #tpu.memory_space<vmem>>, %arg6: memref<2x16x128xf32, #tpu.memory_space<vmem>>, %arg7: memref<2x16x384xf32, #tpu.memory_space<vmem>>) attributes {dimension_semantics = [#tpu.dimension_semantics<parallel>], iteration_bounds = array<i64: 1>, scalar_prefetch = 0 : i64, scratch_operands = 1 : i64, tpu.core_type = #tpu.core_type<tc>, window_params = [{transform_indices = @transform_0, window_bounds = array<i64: 2, 16, 128>}, {pipeline_mode = #tpu.pipeline_mode<synchronous>, transform_indices = @transform_1, window_bounds = array<i64: 384, 128>}, {pipeline_mode = #tpu.pipeline_mode<synchronous>, transform_indices = @transform_2, window_bounds = array<i64: 1, 128>}, {pipeline_mode = #tpu.pipeline_mode<synchronous>, transform_indices = @transform_3, window_bounds = array<i64: 384, 128>}, {pipeline_mode = #tpu.pipeline_mode<synchronous>, transform_indices = @transform_4, window_bounds = array<i64: 1, 128>}, {transform_indices = @transform_5, window_bounds = array<i64: 2, 16, 128>}]} {
    %cst = arith.constant 0.000000e+00 : f32
    %0 = vector.broadcast %cst : f32 to vector<2x1x128xf32>
    %c0 = arith.constant 0 : index
    %c0_0 = arith.constant 0 : index
    %c0_1 = arith.constant 0 : index
    %1 = vector.load %arg7[%c0, %c0_0, %c0_1] : memref<2x16x384xf32, #tpu.memory_space<vmem>>, vector<2x1x128xf32>
    tpu.vector_store %arg7[%c0, %c0_0, %c0_1], %0 {strides = array<i32>} : memref<2x16x384xf32, #tpu.memory_space<vmem>>, vector<2x1x128xf32>,
    %cst_2 = arith.constant 0.000000e+00 : f32
    %2 = vector.broadcast %cst_2 : f32 to vector<2x1x128xf32>
    %c0_3 = arith.constant 0 : index
    %c15 = arith.constant 15 : index
    %c256 = arith.constant 256 : index
    %3 = vector.load %arg7[%c0_3, %c15, %c256] : memref<2x16x384xf32, #tpu.memory_space<vmem>>, vector<2x1x128xf32>
    tpu.vector_store %arg7[%c0_3, %c15, %c256], %2 {strides = array<i32>} : memref<2x16x384xf32, #tpu.memory_space<vmem>>, vector<2x1x128xf32>,
    %c0_4 = arith.constant 0 : index
    %c0_5 = arith.constant 0 : index
    %c0_6 = arith.constant 0 : index
    %4 = vector.load %arg1[%c0_4, %c0_5, %c0_6] : memref<2x16x128xf32, #tpu.memory_space<vmem>>, vector<2x16x128xf32>
    %5 = vector.extract_strided_slice %4 {offsets = [0, 0, 0], sizes = [2, 15, 128], strides = [1, 1, 1]} : vector<2x16x128xf32> to vector<2x15x128xf32>
    %c0_7 = arith.constant 0 : index
    %c1 = arith.constant 1 : index
    %c0_8 = arith.constant 0 : index
    %6 = vector.load %arg7[%c0_7, %c1, %c0_8] : memref<2x16x384xf32, #tpu.memory_space<vmem>>, vector<2x15x128xf32>
    tpu.vector_store %arg7[%c0_7, %c1, %c0_8], %5 {strides = array<i32>} : memref<2x16x384xf32, #tpu.memory_space<vmem>>, vector<2x15x128xf32>,
    %c0_9 = arith.constant 0 : index
    %c0_10 = arith.constant 0 : index
    %c128 = arith.constant 128 : index
    %7 = vector.load %arg7[%c0_9, %c0_10, %c128] : memref<2x16x384xf32, #tpu.memory_space<vmem>>, vector<2x16x128xf32>
    tpu.vector_store %arg7[%c0_9, %c0_10, %c128], %4 {strides = array<i32>} : memref<2x16x384xf32, #tpu.memory_space<vmem>>, vector<2x16x128xf32>,
    %8 = vector.extract_strided_slice %4 {offsets = [0, 1, 0], sizes = [2, 15, 128], strides = [1, 1, 1]} : vector<2x16x128xf32> to vector<2x15x128xf32>
    %c0_11 = arith.constant 0 : index
    %c0_12 = arith.constant 0 : index
    %c256_13 = arith.constant 256 : index
    %9 = vector.load %arg7[%c0_11, %c0_12, %c256_13] : memref<2x16x384xf32, #tpu.memory_space<vmem>>, vector<2x15x128xf32>
    tpu.vector_store %arg7[%c0_11, %c0_12, %c256_13], %8 {strides = array<i32>} : memref<2x16x384xf32, #tpu.memory_space<vmem>>, vector<2x15x128xf32>,
    %c0_14 = arith.constant 0 : index
    %c0_15 = arith.constant 0 : index
    %c0_16 = arith.constant 0 : index
    %10 = vector.load %arg7[%c0_14, %c0_15, %c0_16] : memref<2x16x384xf32, #tpu.memory_space<vmem>>, vector<2x16x384xf32>
    %11 = vector.shape_cast %10 : vector<2x16x384xf32> to vector<32x384xf32>
    %c0_17 = arith.constant 0 : index
    %c0_18 = arith.constant 0 : index
    %12 = vector.load %arg2[%c0_17, %c0_18] : memref<384x128xf32, #tpu.memory_space<vmem>>, vector<384x128xf32>
    %cst_19 = arith.constant dense<0.000000e+00> : vector<32x128xf32>
    %13 = tpu.matmul %11, %12, %cst_19 {dimension_numbers = #tpu.dot_dimension_numbers<[1], [0], [0], [1], [0, 0, 1, 1], [], []>} : vector<32x384xf32>, vector<384x128xf32>, vector<32x128xf32> -> vector<32x128xf32>
    %c0_20 = arith.constant 0 : index
    %c0_21 = arith.constant 0 : index
    %14 = vector.load %arg3[%c0_20, %c0_21] : memref<1x128xf32, #tpu.memory_space<vmem>>, vector<1x128xf32>
    %15 = vector.broadcast %14 : vector<1x128xf32> to vector<32x128xf32>
    %16 = arith.addf %13, %15 : vector<32x128xf32>
    %cst_22 = arith.constant 0.000000e+00 : f32
    %17 = vector.broadcast %cst_22 : f32 to vector<32x128xf32>
    %18 = arith.maximumf %16, %17 : vector<32x128xf32>
    %19 = vector.shape_cast %18 : vector<32x128xf32> to vector<2x16x128xf32>
    %20 = vector.extract_strided_slice %19 {offsets = [0, 0, 0], sizes = [2, 15, 128], strides = [1, 1, 1]} : vector<2x16x128xf32> to vector<2x15x128xf32>
    %c0_23 = arith.constant 0 : index
    %c1_24 = arith.constant 1 : index
    %c0_25 = arith.constant 0 : index
    %21 = vector.load %arg7[%c0_23, %c1_24, %c0_25] : memref<2x16x384xf32, #tpu.memory_space<vmem>>, vector<2x15x128xf32>
    tpu.vector_store %arg7[%c0_23, %c1_24, %c0_25], %20 {strides = array<i32>} : memref<2x16x384xf32, #tpu.memory_space<vmem>>, vector<2x15x128xf32>,
    %c0_26 = arith.constant 0 : index
    %c0_27 = arith.constant 0 : index
    %c128_28 = arith.constant 128 : index
    %22 = vector.load %arg7[%c0_26, %c0_27, %c128_28] : memref<2x16x384xf32, #tpu.memory_space<vmem>>, vector<2x16x128xf32>
    tpu.vector_store %arg7[%c0_26, %c0_27, %c128_28], %19 {strides = array<i32>} : memref<2x16x384xf32, #tpu.memory_space<vmem>>, vector<2x16x128xf32>,
    %23 = vector.extract_strided_slice %19 {offsets = [0, 1, 0], sizes = [2, 15, 128], strides = [1, 1, 1]} : vector<2x16x128xf32> to vector<2x15x128xf32>
    %c0_29 = arith.constant 0 : index
    %c0_30 = arith.constant 0 : index
    %c256_31 = arith.constant 256 : index
    %24 = vector.load %arg7[%c0_29, %c0_30, %c256_31] : memref<2x16x384xf32, #tpu.memory_space<vmem>>, vector<2x15x128xf32>
    tpu.vector_store %arg7[%c0_29, %c0_30, %c256_31], %23 {strides = array<i32>} : memref<2x16x384xf32, #tpu.memory_space<vmem>>, vector<2x15x128xf32>,
    %c0_32 = arith.constant 0 : index
    %c0_33 = arith.constant 0 : index
    %c0_34 = arith.constant 0 : index
    %25 = vector.load %arg7[%c0_32, %c0_33, %c0_34] : memref<2x16x384xf32, #tpu.memory_space<vmem>>, vector<2x16x384xf32>
    %26 = vector.shape_cast %25 : vector<2x16x384xf32> to vector<32x384xf32>
    %c0_35 = arith.constant 0 : index
    %c0_36 = arith.constant 0 : index
    %27 = vector.load %arg4[%c0_35, %c0_36] : memref<384x128xf32, #tpu.memory_space<vmem>>, vector<384x128xf32>
    %cst_37 = arith.constant dense<0.000000e+00> : vector<32x128xf32>
    %28 = tpu.matmul %26, %27, %cst_37 {dimension_numbers = #tpu.dot_dimension_numbers<[1], [0], [0], [1], [0, 0, 1, 1], [], []>} : vector<32x384xf32>, vector<384x128xf32>, vector<32x128xf32> -> vector<32x128xf32>
    %c0_38 = arith.constant 0 : index
    %c0_39 = arith.constant 0 : index
    %29 = vector.load %arg5[%c0_38, %c0_39] : memref<1x128xf32, #tpu.memory_space<vmem>>, vector<1x128xf32>
    %30 = vector.broadcast %29 : vector<1x128xf32> to vector<32x128xf32>
    %31 = arith.addf %28, %30 : vector<32x128xf32>
    %32 = vector.shape_cast %4 : vector<2x16x128xf32> to vector<32x128xf32>
    %33 = arith.addf %31, %32 : vector<32x128xf32>
    %34 = vector.shape_cast %33 : vector<32x128xf32> to vector<2x16x128xf32>
    %c0_40 = arith.constant 0 : index
    %c0_41 = arith.constant 0 : index
    %c0_42 = arith.constant 0 : index
    %35 = vector.load %arg6[%c0_40, %c0_41, %c0_42] : memref<2x16x128xf32, #tpu.memory_space<vmem>>, vector<2x16x128xf32>
    tpu.vector_store %arg6[%c0_40, %c0_41, %c0_42], %34 {strides = array<i32>} : memref<2x16x128xf32, #tpu.memory_space<vmem>>, vector<2x16x128xf32>,
    return
  }
  func.func @transform_0(%arg0: i32) -> (i32, i32, i32) {
    %c0_i32 = arith.constant 0 : i32
    %c0_i32_0 = arith.constant 0 : i32
    %c0_i32_1 = arith.constant 0 : i32
    return %arg0, %c0_i32, %c0_i32_0 : i32, i32, i32
  }
  func.func @transform_1(%arg0: i32) -> (i32, i32) {
    %c0_i32 = arith.constant 0 : i32
    %c0_i32_0 = arith.constant 0 : i32
    %c0_i32_1 = arith.constant 0 : i32
    return %c0_i32, %c0_i32_0 : i32, i32
  }
  func.func @transform_2(%arg0: i32) -> (i32, i32) {
    %c0_i32 = arith.constant 0 : i32
    %c0_i32_0 = arith.constant 0 : i32
    %c0_i32_1 = arith.constant 0 : i32
    return %c0_i32, %c0_i32_0 : i32, i32
  }
  func.func @transform_3(%arg0: i32) -> (i32, i32) {
    %c0_i32 = arith.constant 0 : i32
    %c0_i32_0 = arith.constant 0 : i32
    %c0_i32_1 = arith.constant 0 : i32
    return %c0_i32, %c0_i32_0 : i32, i32
  }
  func.func @transform_4(%arg0: i32) -> (i32, i32) {
    %c0_i32 = arith.constant 0 : i32
    %c0_i32_0 = arith.constant 0 : i32
    %c0_i32_1 = arith.constant 0 : i32
    return %c0_i32, %c0_i32_0 : i32, i32
  }
  func.func @transform_5(%arg0: i32) -> (i32, i32, i32) {
    %c0_i32 = arith.constant 0 : i32
    %c0_i32_0 = arith.constant 0 : i32
    %c0_i32_1 = arith.constant 0 : i32
    return %arg0, %c0_i32, %c0_i32_0 : i32, i32, i32
  }
}

</mosaic_0001>

<llo_original>
// kernel: tile.18
$region0: #{tile.18}
  #allocation0 [shape = 's32[1]{0}', space=sflag, size = 0x4, scoped, tag = 'scoped memory for tile.18']
  %s0 = inlined_call_operand.vmem [shape: f32[4], index: 0, kind: input, shape index: {}]
  %s1 = inlined_call_operand.vmem [shape: f32[16,4], index: 1, kind: output, shape index: {}]
  // Predicated region
  $region2: #{tile.18} parent=0 // pred_check
    _
  $region3: #{tile.18} parent=0 // pred_check_branch
    %3 = sbr.rel (0) target = $region5
  $region4: #{tile.18} parent=0 // pred_region
    _
  $region5: #{tile.18} parent=0 // pred_fallthru
    _
  %v4 = vld [vmem:[%s0] ss:$0 sm:$0xff]
  %5 = vst [vmem:[%s1] sm:$0xff] %v4
  %s6 = scalar_lea.vmem %s1, 8
  %7 = vst [vmem:[%s6] sm:$0xff] %v4

// kernel: tile.19
$region0: #{tile.19}
  %s0 = inlined_call_operand.vmem [shape: f32[16,4], index: 0, kind: input, shape index: {}]
  %s1 = inlined_call_operand.vmem [shape: f32[64], index: 1, kind: output, shape index: {}]
  $region1: #{tile.19} parent=0
    #allocation0 [shape = 'u8[4096]{0}', space=vmem, size = 0x1000, scoped, tag = 'scoped mem for output reshape']
    %v2 = vld [vmem:[%s0] sm:$0x1]
    %vm3 = vcmask 31744
    %4 = vst.msk [vmem:[#allocation0] sm:$0x1] %vm3, %v2
    %s5 = scalar_lea.vmem %s0, 15
    %v6 = vld [vmem:[%s5] sm:$0x1]
    %7 = vrot.lane.b32.xlu0 %v6, 60
    %v8 = vpop.permute.xlu0 %7
    %vm9 = vcmask 523744
    %10 = vst.msk [vmem:[#allocation0] sm:$0x1] %vm9, %v8
    %s11 = scalar_lea.vmem %s0, 14
    %v12 = vld [vmem:[%s11] sm:$0x1]
    %13 = vrot.lane.b32.xlu0 %v12, 56
    %v14 = vpop.permute.xlu0 %13
    %vm15 = vcmask 490944
    %16 = vst.msk [vmem:[#allocation0] sm:$0x1] %vm15, %v14
    %s17 = scalar_lea.vmem %s0, 13
    %v18 = vld [vmem:[%s17] sm:$0x1]
    %19 = vrot.lane.b32.xlu0 %v18, 52
    %v20 = vpop.permute.xlu0 %19
    %vm21 = vcmask 458144
    %22 = vst.msk [vmem:[#allocation0] sm:$0x1] %vm21, %v20
    %s23 = scalar_lea.vmem %s0, 12
    %v24 = vld [vmem:[%s23] sm:$0x1]
    %25 = vrot.lane.b32.xlu0 %v24, 48
    %v26 = vpop.permute.xlu0 %25
    %vm27 = vcmask 425344
    %28 = vst.msk [vmem:[#allocation0] sm:$0x1] %vm27, %v26
    %s29 = scalar_lea.vmem %s0, 11
    %v30 = vld [vmem:[%s29] sm:$0x1]
    %31 = vrot.lane.b32.xlu0 %v30, 44
    %v32 = vpop.permute.xlu0 %31
    %vm33 = vcmask 392544
    %34 = vst.msk [vmem:[#allocation0] sm:$0x1] %vm33, %v32
    %s35 = scalar_lea.vmem %s0, 10
    %v36 = vld [vmem:[%s35] sm:$0x1]
    %37 = vrot.lane.b32.xlu0 %v36, 40
    %v38 = vpop.permute.xlu0 %37
    %vm39 = vcmask 359744
    %40 = vst.msk [vmem:[#allocation0] sm:$0x1] %vm39, %v38
    %s41 = scalar_lea.vmem %s0, 9
    %v42 = vld [vmem:[%s41] sm:$0x1]
    %43 = vrot.lane.b32.xlu0 %v42, 36
    %v44 = vpop.permute.xlu0 %43
    %vm45 = vcmask 326944
    %46 = vst.msk [vmem:[#allocation0] sm:$0x1] %vm45, %v44
    %s47 = scalar_lea.vmem %s0, 8
    %v48 = vld [vmem:[%s47] sm:$0x1]
    %49 = vrot.lane.b32.xlu0 %v48, 32
    %v50 = vpop.permute.xlu0 %49
    %vm51 = vcmask 294144
    %52 = vst.msk [vmem:[#allocation0] sm:$0x1] %vm51, %v50
    %s53 = scalar_lea.vmem %s0, 7
    %v54 = vld [vmem:[%s53] sm:$0x1]
    %55 = vrot.lane.b32.xlu0 %v54, 28
    %v56 = vpop.permute.xlu0 %55
    %vm57 = vcmask 261344
    %58 = vst.msk [vmem:[#allocation0] sm:$0x1] %vm57, %v56
    %s59 = scalar_lea.vmem %s0, 6
    %v60 = vld [vmem:[%s59] sm:$0x1]
    %61 = vrot.lane.b32.xlu0 %v60, 24
    %v62 = vpop.permute.xlu0 %61
    %vm63 = vcmask 228544
    %64 = vst.msk [vmem:[#allocation0] sm:$0x1] %vm63, %v62
    %s65 = scalar_lea.vmem %s0, 5
    %v66 = vld [vmem:[%s65] sm:$0x1]
    %67 = vrot.lane.b32.xlu0 %v66, 20
    %v68 = vpop.permute.xlu0 %67
    %vm69 = vcmask 195744
    %70 = vst.msk [vmem:[#allocation0] sm:$0x1] %vm69, %v68
    %s71 = scalar_lea.vmem %s0, 4
    %v72 = vld [vmem:[%s71] sm:$0x1]
    %73 = vrot.lane.b32.xlu0 %v72, 16
    %v74 = vpop.permute.xlu0 %73
    %vm75 = vcmask 162944
    %76 = vst.msk [vmem:[#allocation0] sm:$0x1] %vm75, %v74
    %s77 = scalar_lea.vmem %s0, 3
    %v78 = vld [vmem:[%s77] sm:$0x1]
    %79 = vrot.lane.b32.xlu0 %v78, 12
    %v80 = vpop.permute.xlu0 %79
    %vm81 = vcmask 130144
    %82 = vst.msk [vmem:[#allocation0] sm:$0x1] %vm81, %v80
    %s83 = scalar_lea.vmem %s0, 2
    %v84 = vld [vmem:[%s83] sm:$0x1]
    %85 = vrot.lane.b32.xlu0 %v84, 8
    %v86 = vpop.permute.xlu0 %85
    %vm87 = vcmask 97344
    %88 = vst.msk [vmem:[#allocation0] sm:$0x1] %vm87, %v86
    %s89 = scalar_lea.vmem %s0, 1
    %v90 = vld [vmem:[%s89] sm:$0x1]
    %91 = vrot.lane.b32.xlu0 %v90, 4
    %v92 = vpop.permute.xlu0 %91
    %vm93 = vcmask 64544
    %94 = vst.msk [vmem:[#allocation0] sm:$0x1] %vm93, %v92
    %s96 = ssub.s32 2, 1
    %v97 = vld [vmem:[#allocation0] sm:%s96]
    %s99 = ssub.s32 2, 1
    %100 = vst [vmem:[%s1] sm:%s99] %v97

// kernel: rb_forward.1
$region0: #{rb_forward.1}
  #allocation0 [shape = 'u32[]', space=smem, size = 0x4, offset = 0x4, fixed_abs, tag = 'smem constant byte address 0x4 - core index']
  #allocation1 [shape = 'u32[72,128]{1,0:T(1,128)}', space=vmem, size = 0x9000, scoped, tag = 'internal scratch']
  #allocation2 [shape = 'f32[2,16,384]{2,1,0:T(8,128)}', space=vmem, size = 0xc000, scoped, tag = 'scratch operand']
  %s0 = inlined_call_operand.vmem [shape: f32[2,16,128], index: 0, kind: input, shape index: {}]
  %s1 = inlined_call_operand.vmem [shape: f32[384,128], index: 1, kind: input, shape index: {}]
  %s2 = inlined_call_operand.vmem [shape: f32[1,128], index: 2, kind: input, shape index: {}]
  %s3 = inlined_call_operand.vmem [shape: f32[384,128], index: 3, kind: input, shape index: {}]
  %s4 = inlined_call_operand.vmem [shape: f32[1,128], index: 4, kind: input, shape index: {}]
  %s5 = inlined_call_operand.vmem [shape: f32[2,16,128], index: 5, kind: output, shape index: {}]
  %s6 = sld [smem:[#allocation0]]
  $region30: #{rb_forward.1} parent=0
    _
  %s8 = ssub.s32 1, %s6
  %s9 = scalar_select 0, %s8, %s6
  // Predicated region
  $region2: #{rb_forward.1} parent=0 // pred_check
    _
  $region3: #{rb_forward.1} parent=0 // pred_check_branch
    %11 = sbr.rel (0) target = $region5
  $region4: #{rb_forward.1} parent=0 // pred_region
    _
  $region5: #{rb_forward.1} parent=0 // pred_fallthru
    _
  // Predicated region
  $region6: #{rb_forward.1} parent=0 // pred_check
    _
  $region7: #{rb_forward.1} parent=0 // pred_check_branch
    %13 = sbr.rel (0) target = $region9
  $region8: #{rb_forward.1} parent=0 // pred_region
    _
  $region9: #{rb_forward.1} parent=0 // pred_fallthru
    _
  // Predicated region
  $region10: #{rb_forward.1} parent=0 // pred_check
    _
  $region11: #{rb_forward.1} parent=0 // pred_check_branch
    %15 = sbr.rel (0) target = $region13
  $region12: #{rb_forward.1} parent=0 // pred_region
    _
  $region13: #{rb_forward.1} parent=0 // pred_fallthru
    _
  // Predicated region
  $region14: #{rb_forward.1} parent=0 // pred_check
    _
  $region15: #{rb_forward.1} parent=0 // pred_check_branch
    %17 = sbr.rel (0) target = $region17
  $region16: #{rb_forward.1} parent=0 // pred_region
    _
  $region17: #{rb_forward.1} parent=0 // pred_fallthru
    _
  // Predicated region
  $region18: #{rb_forward.1} parent=0 // pred_check
    _
  $region19: #{rb_forward.1} parent=0 // pred_check_branch
    %19 = sbr.rel (0) target = $region21
  $region20: #{rb_forward.1} parent=0 // pred_region
    _
  $region21: #{rb_forward.1} parent=0 // pred_fallthru
    _
  %20 = vst [vmem:[#allocation2] sm:$0x1] 0.0
  %21 = vst [vmem:[#allocation2 + $0x30] sm:$0x1] 0.0
  %22 = vst [vmem:[#allocation2 + $0x2f] sm:$0x1] 0.0
  %23 = vst [vmem:[#allocation2 + $0x5f] sm:$0x1] 0.0
  %v24 = vld [vmem:[%s0] sm:$0xff]
  %v25 = vld [vmem:[%s0 + $0x8] sm:$0xff]
  %v26 = vld [vmem:[%s0 + $0x10] sm:$0xff]
  %v27 = vld [vmem:[%s0 + $0x18] sm:$0xff]
  %vm32 = vcmask 1040384
  %v33 = vrot.slane %v24, 7
  %v34 = vrot.slane %v25, 7
  %v35 = vsel %vm32, %v33, %v34
  %v36 = vrot.slane %v26, 7
  %v37 = vrot.slane %v27, 7
  %v38 = vsel %vm32, %v36, %v37
  %43 = vst [vmem:[#allocation2] sm:$0xfe] %v33
  %44 = vst [vmem:[#allocation2 + $0x18] sm:$0xff] %v35
  %45 = vst [vmem:[#allocation2 + $0x30] sm:$0xfe] %v36
  %46 = vst [vmem:[#allocation2 + $0x48] sm:$0xff] %v38
  %47 = vst [vmem:[#allocation2 + $0x8] sm:$0xff] %v24
  %48 = vst [vmem:[#allocation2 + $0x20] sm:$0xff] %v25
  %49 = vst [vmem:[#allocation2 + $0x38] sm:$0xff] %v26
  %50 = vst [vmem:[#allocation2 + $0x50] sm:$0xff] %v27
  %vm51 = vcmask 1046528
  %v52 = vrot.slane %v24, 1
  %v53 = vrot.slane %v25, 1
  %v54 = vsel %vm51, %v52, %v53
  %v55 = vrot.slane %v26, 1
  %v56 = vrot.slane %v27, 1
  %v57 = vsel %vm51, %v55, %v56
  %62 = vst [vmem:[#allocation2 + $0x10] sm:$0xff] %v54
  %63 = vst [vmem:[#allocation2 + $0x28] sm:$0x7f] %v53
  %64 = vst [vmem:[#allocation2 + $0x40] sm:$0xff] %v57
  %65 = vst [vmem:[#allocation2 + $0x58] sm:$0x7f] %v56
  %v66 = vld [vmem:[#allocation2] sm:$0xff]
  %v67 = vld [vmem:[#allocation2 + $0x8] sm:$0xff]
  %v68 = vld [vmem:[#allocation2 + $0x10] sm:$0xff]
  %v69 = vld [vmem:[#allocation2 + $0x18] sm:$0xff]
  %v70 = vld [vmem:[#allocation2 + $0x20] sm:$0xff]
  %v71 = vld [vmem:[#allocation2 + $0x28] sm:$0xff]
  %v72 = vld [vmem:[#allocation2 + $0x30] sm:$0xff]
  %v73 = vld [vmem:[#allocation2 + $0x38] sm:$0xff]
  %v74 = vld [vmem:[#allocation2 + $0x40] sm:$0xff]
  %v75 = vld [vmem:[#allocation2 + $0x48] sm:$0xff]
  %v76 = vld [vmem:[#allocation2 + $0x50] sm:$0xff]
  %v77 = vld [vmem:[#allocation2 + $0x58] sm:$0xff]
  %v78 = vld [vmem:[%s1] sm:$0xff]
  %v79 = vld [vmem:[%s1 + $0x8] sm:$0xff]
  %v80 = vld [vmem:[%s1 + $0x10] sm:$0xff]
  %v81 = vld [vmem:[%s1 + $0x18] sm:$0xff]
  %v82 = vld [vmem:[%s1 + $0x20] sm:$0xff]
  %v83 = vld [vmem:[%s1 + $0x28] sm:$0xff]
  %v84 = vld [vmem:[%s1 + $0x30] sm:$0xff]
  %v85 = vld [vmem:[%s1 + $0x38] sm:$0xff]
  %v86 = vld [vmem:[%s1 + $0x40] sm:$0xff]
  %v87 = vld [vmem:[%s1 + $0x48] sm:$0xff]
  %v88 = vld [vmem:[%s1 + $0x50] sm:$0xff]
  %v89 = vld [vmem:[%s1 + $0x58] sm:$0xff]
  %v90 = vld [vmem:[%s1 + $0x60] sm:$0xff]
  %v91 = vld [vmem:[%s1 + $0x68] sm:$0xff]
  %v92 = vld [vmem:[%s1 + $0x70] sm:$0xff]
  %v93 = vld [vmem:[%s1 + $0x78] sm:$0xff]
  %v94 = vld [vmem:[%s1 + $0x80] sm:$0xff]
  %v95 = vld [vmem:[%s1 + $0x88] sm:$0xff]
  %v96 = vld [vmem:[%s1 + $0x90] sm:$0xff]
  %v97 = vld [vmem:[%s1 + $0x98] sm:$0xff]
  %v98 = vld [vmem:[%s1 + $0xa0] sm:$0xff]
  %v99 = vld [vmem:[%s1 + $0xa8] sm:$0xff]
  %v100 = vld [vmem:[%s1 + $0xb0] sm:$0xff]
  %v101 = vld [vmem:[%s1 + $0xb8] sm:$0xff]
  %v102 = vld [vmem:[%s1 + $0xc0] sm:$0xff]
  %v103 = vld [vmem:[%s1 + $0xc8] sm:$0xff]
  %v104 = vld [vmem:[%s1 + $0xd0] sm:$0xff]
  %v105 = vld [vmem:[%s1 + $0xd8] sm:$0xff]
  %v106 = vld [vmem:[%s1 + $0xe0] sm:$0xff]
  %v107 = vld [vmem:[%s1 + $0xe8] sm:$0xff]
  %v108 = vld [vmem:[%s1 + $0xf0] sm:$0xff]
  %v109 = vld [vmem:[%s1 + $0xf8] sm:$0xff]
  %v110 = vld [vmem:[%s1 + $0x100] sm:$0xff]
  %v111 = vld [vmem:[%s1 + $0x108] sm:$0xff]
  %v112 = vld [vmem:[%s1 + $0x110] sm:$0xff]
  %v113 = vld [vmem:[%s1 + $0x118] sm:$0xff]
  %v114 = vld [vmem:[%s1 + $0x120] sm:$0xff]
  %v115 = vld [vmem:[%s1 + $0x128] sm:$0xff]
  %v116 = vld [vmem:[%s1 + $0x130] sm:$0xff]
  %v117 = vld [vmem:[%s1 + $0x138] sm:$0xff]
  %v118 = vld [vmem:[%s1 + $0x140] sm:$0xff]
  %v119 = vld [vmem:[%s1 + $0x148] sm:$0xff]
  %v120 = vld [vmem:[%s1 + $0x150] sm:$0xff]
  %v121 = vld [vmem:[%s1 + $0x158] sm:$0xff]
  %v122 = vld [vmem:[%s1 + $0x160] sm:$0xff]
  %v123 = vld [vmem:[%s1 + $0x168] sm:$0xff]
  %v124 = vld [vmem:[%s1 + $0x170] sm:$0xff]
  %v125 = vld [vmem:[%s1 + $0x178] sm:$0xff]
  %v126 = vld [vmem:[%s2] sm:$0x1]
  %v128 = vperm.slane %v126, 0
  %130 = vmatpush.msra.mxu0 %v93
  %131 = vmatpush.msra.mxu0 %v92
  %132 = vmatpush.msra.mxu0 %v91
  %133 = vmatpush.msra.mxu0 %v90
  %134 = vmatpush.msra.mxu0 %v89
  %135 = vmatpush.msra.mxu0 %v88
  %136 = vmatpush.msra.mxu0 %v87
  %137 = vmatpush.msra.mxu0 %v86
  %138 = vmatpush.msra.mxu0 %v85
  %139 = vmatpush.msra.mxu0 %v84
  %140 = vmatpush.msra.mxu0 %v83
  %141 = vmatpush.msra.mxu0 %v82
  %142 = vmatpush.msra.mxu0 %v81
  %143 = vmatpush.msra.mxu0 %v80
  %144 = vmatpush.msra.mxu0 %v79
  %145 = vmatpush.msra.mxu0 %v78
  %146 = vmatmul.f32.gmra.mxu0 %v66
  %v147 = vpop.f32.mrf.mxu0
  %v148 = vadd.f32 %v128, %v147
  %149 = vmatmul.f32.gmra.mxu0 %v69
  %v150 = vpop.f32.mrf.mxu0
  %v151 = vadd.f32 %v128, %v150
  %152 = vmatmul.f32.gmra.mxu0 %v72
  %v153 = vpop.f32.mrf.mxu0
  %v154 = vadd.f32 %v128, %v153
  %155 = vmatmul.f32.gmra.mxu0 %v75
  %v156 = vpop.f32.mrf.mxu0
  %v157 = vadd.f32 %v128, %v156
  %158 = vdwg.mxu0
  %159 = vmatpush.msra.mxu0 %v109
  %160 = vmatpush.msra.mxu0 %v108
  %161 = vmatpush.msra.mxu0 %v107
  %162 = vmatpush.msra.mxu0 %v106
  %163 = vmatpush.msra.mxu0 %v105
  %164 = vmatpush.msra.mxu0 %v104
  %165 = vmatpush.msra.mxu0 %v103
  %166 = vmatpush.msra.mxu0 %v102
  %167 = vmatpush.msra.mxu0 %v101
  %168 = vmatpush.msra.mxu0 %v100
  %169 = vmatpush.msra.mxu0 %v99
  %170 = vmatpush.msra.mxu0 %v98
  %171 = vmatpush.msra.mxu0 %v97
  %172 = vmatpush.msra.mxu0 %v96
  %173 = vmatpush.msra.mxu0 %v95
  %174 = vmatpush.msra.mxu0 %v94
  %175 = vmatmul.f32.gmra.mxu0 %v67
  %v176 = vpop.f32.mrf.mxu0
  %v177 = vadd.f32 %v148, %v176
  %178 = vmatmul.f32.gmra.mxu0 %v70
  %v179 = vpop.f32.mrf.mxu0
  %v180 = vadd.f32 %v151, %v179
  %181 = vmatmul.f32.gmra.mxu0 %v73
  %v182 = vpop.f32.mrf.mxu0
  %v183 = vadd.f32 %v154, %v182
  %184 = vmatmul.f32.gmra.mxu0 %v76
  %v185 = vpop.f32.mrf.mxu0
  %v186 = vadd.f32 %v157, %v185
  %187 = vdwg.mxu0
  %188 = vmatpush.msra.mxu0 %v125
  %189 = vmatpush.msra.mxu0 %v124
  %190 = vmatpush.msra.mxu0 %v123
  %191 = vmatpush.msra.mxu0 %v122
  %192 = vmatpush.msra.mxu0 %v121
  %193 = vmatpush.msra.mxu0 %v120
  %194 = vmatpush.msra.mxu0 %v119
  %195 = vmatpush.msra.mxu0 %v118
  %196 = vmatpush.msra.mxu0 %v117
  %197 = vmatpush.msra.mxu0 %v116
  %198 = vmatpush.msra.mxu0 %v115
  %199 = vmatpush.msra.mxu0 %v114
  %200 = vmatpush.msra.mxu0 %v113
  %201 = vmatpush.msra.mxu0 %v112
  %202 = vmatpush.msra.mxu0 %v111
  %203 = vmatpush.msra.mxu0 %v110
  %204 = vmatmul.f32.gmra.mxu0 %v68
  %v205 = vpop.f32.mrf.mxu0
  %v206 = vadd.f32 %v177, %v205
  %207 = vmatmul.f32.gmra.mxu0 %v71
  %v208 = vpop.f32.mrf.mxu0
  %v209 = vadd.f32 %v180, %v208
  %210 = vmatmul.f32.gmra.mxu0 %v74
  %v211 = vpop.f32.mrf.mxu0
  %v212 = vadd.f32 %v183, %v211
  %213 = vmatmul.f32.gmra.mxu0 %v77
  %v214 = vpop.f32.mrf.mxu0
  %v215 = vadd.f32 %v186, %v214
  %216 = vdwg.mxu0
  %v217 = vmax.f32 %v206, 0.0
  %v218 = vmax.f32 %v209, 0.0
  %v219 = vmax.f32 %v212, 0.0
  %v220 = vmax.f32 %v215, 0.0
  %v225 = vrot.slane %v217, 7
  %v226 = vrot.slane %v218, 7
  %v227 = vsel %vm32, %v225, %v226
  %v228 = vrot.slane %v219, 7
  %v229 = vrot.slane %v220, 7
  %v230 = vsel %vm32, %v228, %v229
  %235 = vst [vmem:[#allocation2] sm:$0xfe] %v225
  %236 = vst [vmem:[#allocation2 + $0x18] sm:$0xff] %v227
  %237 = vst [vmem:[#allocation2 + $0x30] sm:$0xfe] %v228
  %238 = vst [vmem:[#allocation2 + $0x48] sm:$0xff] %v230
  %239 = vst [vmem:[#allocation2 + $0x8] sm:$0xff] %v217
  %240 = vst [vmem:[#allocation2 + $0x20] sm:$0xff] %v218
  %241 = vst [vmem:[#allocation2 + $0x38] sm:$0xff] %v219
  %242 = vst [vmem:[#allocation2 + $0x50] sm:$0xff] %v220
  %v243 = vrot.slane %v217, 1
  %v244 = vrot.slane %v218, 1
  %v245 = vsel %vm51, %v243, %v244
  %v246 = vrot.slane %v219, 1
  %v247 = vrot.slane %v220, 1
  %v248 = vsel %vm51, %v246, %v247
  %253 = vst [vmem:[#allocation2 + $0x10] sm:$0xff] %v245
  %254 = vst [vmem:[#allocation2 + $0x28] sm:$0x7f] %v244
  %255 = vst [vmem:[#allocation2 + $0x40] sm:$0xff] %v248
  %256 = vst [vmem:[#allocation2 + $0x58] sm:$0x7f] %v247
  %v257 = vld [vmem:[#allocation2] sm:$0xff]
  %v258 = vld [vmem:[#allocation2 + $0x8] sm:$0xff]
  %v259 = vld [vmem:[#allocation2 + $0x10] sm:$0xff]
  %v260 = vld [vmem:[#allocation2 + $0x18] sm:$0xff]
  %v261 = vld [vmem:[#allocation2 + $0x20] sm:$0xff]
  %v262 = vld [vmem:[#allocation2 + $0x28] sm:$0xff]
  %v263 = vld [vmem:[#allocation2 + $0x30] sm:$0xff]
  %v264 = vld [vmem:[#allocation2 + $0x38] sm:$0xff]
  %v265 = vld [vmem:[#allocation2 + $0x40] sm:$0xff]
  %v266 = vld [vmem:[#allocation2 + $0x48] sm:$0xff]
  %v267 = vld [vmem:[#allocation2 + $0x50] sm:$0xff]
  %v268 = vld [vmem:[#allocation2 + $0x58] sm:$0xff]
  %v269 = vld [vmem:[%s3] sm:$0xff]
  %v270 = vld [vmem:[%s3 + $0x8] sm:$0xff]
  %v271 = vld [vmem:[%s3 + $0x10] sm:$0xff]
  %v272 = vld [vmem:[%s3 + $0x18] sm:$0xff]
  %v273 = vld [vmem:[%s3 + $0x20] sm:$0xff]
  %v274 = vld [vmem:[%s3 + $0x28] sm:$0xff]
  %v275 = vld [vmem:[%s3 + $0x30] sm:$0xff]
  %v276 = vld [vmem:[%s3 + $0x38] sm:$0xff]
  %v277 = vld [vmem:[%s3 + $0x40] sm:$0xff]
  %v278 = vld [vmem:[%s3 + $0x48] sm:$0xff]
  %v279 = vld [vmem:[%s3 + $0x50] sm:$0xff]
  %v280 = vld [vmem:[%s3 + $0x58] sm:$0xff]
  %v281 = vld [vmem:[%s3 + $0x60] sm:$0xff]
  %v282 = vld [vmem:[%s3 + $0x68] sm:$0xff]
  %v283 = vld [vmem:[%s3 + $0x70] sm:$0xff]
  %v284 = vld [vmem:[%s3 + $0x78] sm:$0xff]
  %v285 = vld [vmem:[%s3 + $0x80] sm:$0xff]
  %v286 = vld [vmem:[%s3 + $0x88] sm:$0xff]
  %v287 = vld [vmem:[%s3 + $0x90] sm:$0xff]
  %v288 = vld [vmem:[%s3 + $0x98] sm:$0xff]
  %v289 = vld [vmem:[%s3 + $0xa0] sm:$0xff]
  %v290 = vld [vmem:[%s3 + $0xa8] sm:$0xff]
  %v291 = vld [vmem:[%s3 + $0xb0] sm:$0xff]
  %v292 = vld [vmem:[%s3 + $0xb8] sm:$0xff]
  %v293 = vld [vmem:[%s3 + $0xc0] sm:$0xff]
  %v294 = vld [vmem:[%s3 + $0xc8] sm:$0xff]
  %v295 = vld [vmem:[%s3 + $0xd0] sm:$0xff]
  %v296 = vld [vmem:[%s3 + $0xd8] sm:$0xff]
  %v297 = vld [vmem:[%s3 + $0xe0] sm:$0xff]
  %v298 = vld [vmem:[%s3 + $0xe8] sm:$0xff]
  %v299 = vld [vmem:[%s3 + $0xf0] sm:$0xff]
  %v300 = vld [vmem:[%s3 + $0xf8] sm:$0xff]
  %v301 = vld [vmem:[%s3 + $0x100] sm:$0xff]
  %v302 = vld [vmem:[%s3 + $0x108] sm:$0xff]
  %v303 = vld [vmem:[%s3 + $0x110] sm:$0xff]
  %v304 = vld [vmem:[%s3 + $0x118] sm:$0xff]
  %v305 = vld [vmem:[%s3 + $0x120] sm:$0xff]
  %v306 = vld [vmem:[%s3 + $0x128] sm:$0xff]
  %v307 = vld [vmem:[%s3 + $0x130] sm:$0xff]
  %v308 = vld [vmem:[%s3 + $0x138] sm:$0xff]
  %v309 = vld [vmem:[%s3 + $0x140] sm:$0xff]
  %v310 = vld [vmem:[%s3 + $0x148] sm:$0xff]
  %v311 = vld [vmem:[%s3 + $0x150] sm:$0xff]
  %v312 = vld [vmem:[%s3 + $0x158] sm:$0xff]
  %v313 = vld [vmem:[%s3 + $0x160] sm:$0xff]
  %v314 = vld [vmem:[%s3 + $0x168] sm:$0xff]
  %v315 = vld [vmem:[%s3 + $0x170] sm:$0xff]
  %v316 = vld [vmem:[%s3 + $0x178] sm:$0xff]
  %v317 = vld [vmem:[%s4] sm:$0x1]
  %v319 = vperm.slane %v317, 0
  %321 = vmatpush.msra.mxu0 %v284
  %322 = vmatpush.msra.mxu0 %v283
  %323 = vmatpush.msra.mxu0 %v282
  %324 = vmatpush.msra.mxu0 %v281
  %325 = vmatpush.msra.mxu0 %v280
  %326 = vmatpush.msra.mxu0 %v279
  %327 = vmatpush.msra.mxu0 %v278
  %328 = vmatpush.msra.mxu0 %v277
  %329 = vmatpush.msra.mxu0 %v276
  %330 = vmatpush.msra.mxu0 %v275
  %331 = vmatpush.msra.mxu0 %v274
  %332 = vmatpush.msra.mxu0 %v273
  %333 = vmatpush.msra.mxu0 %v272
  %334 = vmatpush.msra.mxu0 %v271
  %335 = vmatpush.msra.mxu0 %v270
  %336 = vmatpush.msra.mxu0 %v269
  %337 = vmatmul.f32.gmra.mxu0 %v257
  %v338 = vpop.f32.mrf.mxu0
  %v339 = vadd.f32 %v319, %v338
  %340 = vmatmul.f32.gmra.mxu0 %v260
  %v341 = vpop.f32.mrf.mxu0
  %v342 = vadd.f32 %v319, %v341
  %343 = vmatmul.f32.gmra.mxu0 %v263
  %v344 = vpop.f32.mrf.mxu0
  %v345 = vadd.f32 %v319, %v344
  %346 = vmatmul.f32.gmra.mxu0 %v266
  %v347 = vpop.f32.mrf.mxu0
  %v348 = vadd.f32 %v319, %v347
  %349 = vdwg.mxu0
  %350 = vmatpush.msra.mxu0 %v300
  %351 = vmatpush.msra.mxu0 %v299
  %352 = vmatpush.msra.mxu0 %v298
  %353 = vmatpush.msra.mxu0 %v297
  %354 = vmatpush.msra.mxu0 %v296
  %355 = vmatpush.msra.mxu0 %v295
  %356 = vmatpush.msra.mxu0 %v294
  %357 = vmatpush.msra.mxu0 %v293
  %358 = vmatpush.msra.mxu0 %v292
  %359 = vmatpush.msra.mxu0 %v291
  %360 = vmatpush.msra.mxu0 %v290
  %361 = vmatpush.msra.mxu0 %v289
  %362 = vmatpush.msra.mxu0 %v288
  %363 = vmatpush.msra.mxu0 %v287
  %364 = vmatpush.msra.mxu0 %v286
  %365 = vmatpush.msra.mxu0 %v285
  %366 = vmatmul.f32.gmra.mxu0 %v258
  %v367 = vpop.f32.mrf.mxu0
  %v368 = vadd.f32 %v339, %v367
  %369 = vmatmul.f32.gmra.mxu0 %v261
  %v370 = vpop.f32.mrf.mxu0
  %v371 = vadd.f32 %v342, %v370
  %372 = vmatmul.f32.gmra.mxu0 %v264
  %v373 = vpop.f32.mrf.mxu0
  %v374 = vadd.f32 %v345, %v373
  %375 = vmatmul.f32.gmra.mxu0 %v267
  %v376 = vpop.f32.mrf.mxu0
  %v377 = vadd.f32 %v348, %v376
  %378 = vdwg.mxu0
  %379 = vmatpush.msra.mxu0 %v316
  %380 = vmatpush.msra.mxu0 %v315
  %381 = vmatpush.msra.mxu0 %v314
  %382 = vmatpush.msra.mxu0 %v313
  %383 = vmatpush.msra.mxu0 %v312
  %384 = vmatpush.msra.mxu0 %v311
  %385 = vmatpush.msra.mxu0 %v310
  %386 = vmatpush.msra.mxu0 %v309
  %387 = vmatpush.msra.mxu0 %v308
  %388 = vmatpush.msra.mxu0 %v307
  %389 = vmatpush.msra.mxu0 %v306
  %390 = vmatpush.msra.mxu0 %v305
  %391 = vmatpush.msra.mxu0 %v304
  %392 = vmatpush.msra.mxu0 %v303
  %393 = vmatpush.msra.mxu0 %v302
  %394 = vmatpush.msra.mxu0 %v301
  %395 = vmatmul.f32.gmra.mxu0 %v259
  %v396 = vpop.f32.mrf.mxu0
  %v397 = vadd.f32 %v368, %v396
  %398 = vmatmul.f32.gmra.mxu0 %v262
  %v399 = vpop.f32.mrf.mxu0
  %v400 = vadd.f32 %v371, %v399
  %401 = vmatmul.f32.gmra.mxu0 %v265
  %v402 = vpop.f32.mrf.mxu0
  %v403 = vadd.f32 %v374, %v402
  %404 = vmatmul.f32.gmra.mxu0 %v268
  %v405 = vpop.f32.mrf.mxu0
  %v406 = vadd.f32 %v377, %v405
  %407 = vdwg.mxu0
  %v408 = vadd.f32 %v397, %v24
  %v409 = vadd.f32 %v400, %v25
  %v410 = vadd.f32 %v403, %v26
  %v411 = vadd.f32 %v406, %v27
  %412 = vst [vmem:[%s5] sm:$0xff] %v408
  %413 = vst [vmem:[%s5 + $0x8] sm:$0xff] %v409
  %414 = vst [vmem:[%s5 + $0x10] sm:$0xff] %v410
  %415 = vst [vmem:[%s5 + $0x18] sm:$0xff] %v411
  // Predicated region
  $region22: #{rb_forward.1} parent=0 // pred_check
    _
  $region23: #{rb_forward.1} parent=0 // pred_check_branch
    %417 = sbr.rel (0) target = $region25
  $region24: #{rb_forward.1} parent=0 // pred_region
    _
  $region25: #{rb_forward.1} parent=0 // pred_fallthru
    _
  // Predicated region
  $region26: #{rb_forward.1} parent=0 // pred_check
    _
  $region27: #{rb_forward.1} parent=0 // pred_check_branch
    %419 = sbr.rel (0) target = $region29
  $region28: #{rb_forward.1} parent=0 // pred_region
    _
  $region29: #{rb_forward.1} parent=0 // pred_fallthru
    _

</llo_original>
